<compile_context>
chip_gen: v5e
topology: v5e:2x2
jax: 0.10.0
libtpu: 0.0.40
codegen_flags: <defaults>
</compile_context>

<pallas_src>
import jax
import jax.numpy as jnp
from jax.experimental import pallas as pl
from jax.experimental.pallas import tpu as pltpu

_SUBLANE = 8
_LANE = 128


def _round_up(a, b):
    return ((a + b - 1) // b) * b


def _mlr_kernel(wb_ref, x_ref, o_ref):
    # wb_ref: (3,) f32 in SMEM -> [w0, w1, b], read on the scalar path.
    # x_ref : (2, tile_rows, L) tile of the feature-major input (native dtype).
    # o_ref : (tile_rows, L) tile of the output (full-vreg unmasked stores).
    w0 = wb_ref[0]
    w1 = wb_ref[1]
    b = wb_ref[2]
    x0 = x_ref[0].astype(jnp.float32)
    x1 = x_ref[1].astype(jnp.float32)
    # Pure VPU: two scalar-broadcast multiplies + two adds per vreg.
    o_ref[...] = (x0 * w0 + x1 * w1 + b).astype(o_ref.dtype)


def mlr_forward(x, weight, bias, *, lane_tile=512, row_tile=512):
    """Forward of nn.Linear(2, 1): y = x @ weight.T + bias.

    x: (N, 2), weight: (1, 2) (PyTorch layout), bias: (1,).
    Returns: (N, 1) in x.dtype.
    """
    n, in_f = x.shape
    out_f, in_f_w = weight.shape
    assert in_f == 2 and in_f_w == 2 and out_f == 1

    # ---- choose a sublane/lane-dense tiling of the (flattened) batch ----
    L = max(_LANE, _round_up(lane_tile, _LANE))               # lanes per row
    rows_needed = _round_up(max(1, pl.cdiv(n, L)), _SUBLANE)  # 8-row aligned
    tile_rows = min(_round_up(max(row_tile, _SUBLANE), _SUBLANE), rows_needed)
    rows_total = _round_up(rows_needed, tile_rows)
    grid_n = rows_total // tile_rows
    # Keep >= 2 grid steps for non-tiny batches so v7x's two TensorCores both
    # get work along the "parallel" axis.
    if grid_n == 1 and rows_needed >= 2 * _SUBLANE:
        tile_rows = _round_up((rows_needed + 1) // 2, _SUBLANE)
        rows_total = 2 * tile_rows
        grid_n = 2
    n_pad = rows_total * L

    # ---- layout plumbing (single fused pad+reshape, no wrapper-side cast) ----
    x_t = jnp.pad(x.T, ((0, 0), (0, n_pad - n))).reshape(in_f, rows_total, L)
    # 12 bytes of parameters -> one small SMEM array instead of VMEM blocks.
    wb = jnp.concatenate([weight.reshape(-1), bias.reshape(-1)]).astype(jnp.float32)

    in_item = jnp.dtype(x.dtype).itemsize
    out_item = in_item
    tile_elems = tile_rows * L
    # Double-buffered input + output tiles, plus slack for scalars/internal use.
    vmem_needed = 2 * (in_f * tile_elems * in_item) + 2 * (tile_elems * out_item)
    vmem_limit = int(min(64 * 1024 * 1024,
                         max(vmem_needed + (2 << 20), 16 * 1024 * 1024)))

    out_t = pl.pallas_call(
        _mlr_kernel,
        out_shape=jax.ShapeDtypeStruct((rows_total, L), x.dtype),
        grid=(grid_n,),
        in_specs=[
            # Whole (3,) parameter array lives in SMEM (no per-step DMA).
            pl.BlockSpec(memory_space=pltpu.MemorySpace.SMEM),
            # Streaming sublane/lane-dense batch tiles of the feature-major input.
            pl.BlockSpec((in_f, tile_rows, L), lambda i: (0, i, 0)),
        ],
        out_specs=pl.BlockSpec((tile_rows, L), lambda i: (i, 0)),
        compiler_params=pltpu.CompilerParams(
            dimension_semantics=("parallel",),
            vmem_limit_bytes=vmem_limit,
        ),
        cost_estimate=pl.CostEstimate(
            flops=4 * n_pad,
            transcendentals=0,
            bytes_accessed=in_f * n_pad * in_item + n_pad * out_item,
        ),
    )(wb, x_t)

    # Padded batch order is already row-major over (rows, L): no final transpose.
    return out_t.reshape(-1)[:n].reshape(n, out_f)


if __name__ == "__main__":
    key = jax.random.PRNGKey(0)
    kx, kw, kb = jax.random.split(key, 3)

    # Shapes consistent with nn.Linear(2, 1): batch=8, in_features=2, out=1.
    N, IN_F, OUT_F = 8, 2, 1
    x = jax.random.normal(kx, (N, IN_F), dtype=jnp.float32)

    # Deterministic init mimicking PyTorch's uniform(-1/sqrt(fan_in), +...).
    bound = 1.0 / jnp.sqrt(jnp.float32(IN_F))
    weight = jax.random.uniform(kw, (OUT_F, IN_F), jnp.float32, -bound, bound)
    bias = jax.random.uniform(kb, (OUT_F,), jnp.float32, -bound, bound)

    # Small-batch run (single grid step, minimal 8x512 tile).
    y = mlr_forward(x, weight, bias)
    jax.block_until_ready(y)
    y_ref = x @ weight.T + bias
    assert y.shape == (N, OUT_F)
    assert jnp.allclose(y, y_ref, atol=1e-5, rtol=1e-5)

    # Multi-tile run (grid > 1) exercising the batch tiling / index_map path.
    N2 = 3000
    x2 = jax.random.normal(kx, (N2, IN_F), dtype=jnp.float32)
    y2 = mlr_forward(x2, weight, bias, lane_tile=128, row_tile=8)
    jax.block_until_ready(y2)
    y2_ref = x2 @ weight.T + bias
    assert y2.shape == (N2, OUT_F)
    assert jnp.allclose(y2, y2_ref, atol=1e-5, rtol=1e-5)

    # Medium batch with default tiles: exercises the 2-way split (megacore) path.
    N3 = 5000
    x3 = jax.random.normal(kx, (N3, IN_F), dtype=jnp.float32)
    y3 = mlr_forward(x3, weight, bias)
    jax.block_until_ready(y3)
    y3_ref = x3 @ weight.T + bias
    assert y3.shape == (N3, OUT_F)
    assert jnp.allclose(y3, y3_ref, atol=1e-5, rtol=1e-5)

    print("KERNEL_OK")
</pallas_src>

<mosaic_0001>
module attributes {stable_mosaic.version = 11 : i64} {
  func.func @_mlr_kernel(%arg0: i32, %arg1: memref<3xf32, #tpu.memory_space<smem>>, %arg2: memref<2x8x512xf32, #tpu.memory_space<vmem>>, %arg3: memref<8x512xf32, #tpu.memory_space<vmem>>) attributes {dimension_semantics = [#tpu.dimension_semantics<parallel>], iteration_bounds = array<i64: 1>, scalar_prefetch = 0 : i64, scratch_operands = 0 : i64, tpu.core_type = #tpu.core_type<tc>, window_params = [{transform_indices = @transform_0, window_bounds = array<i64: 3>}, {transform_indices = @transform_1, window_bounds = array<i64: 2, 8, 512>}, {transform_indices = @transform_2, window_bounds = array<i64: 8, 512>}]} {
    %c0 = arith.constant 0 : index
    %0 = memref.load %arg1[%c0] : memref<3xf32, #tpu.memory_space<smem>>
    %c1 = arith.constant 1 : index
    %1 = memref.load %arg1[%c1] : memref<3xf32, #tpu.memory_space<smem>>
    %c2 = arith.constant 2 : index
    %2 = memref.load %arg1[%c2] : memref<3xf32, #tpu.memory_space<smem>>
    %c0_0 = arith.constant 0 : index
    %c0_1 = arith.constant 0 : index
    %c0_2 = arith.constant 0 : index
    %3 = vector.load %arg2[%c0_0, %c0_1, %c0_2] : memref<2x8x512xf32, #tpu.memory_space<vmem>>, vector<1x8x512xf32>
    %4 = vector.shape_cast %3 : vector<1x8x512xf32> to vector<8x512xf32>
    %c1_3 = arith.constant 1 : index
    %c0_4 = arith.constant 0 : index
    %c0_5 = arith.constant 0 : index
    %5 = vector.load %arg2[%c1_3, %c0_4, %c0_5] : memref<2x8x512xf32, #tpu.memory_space<vmem>>, vector<1x8x512xf32>
    %6 = vector.shape_cast %5 : vector<1x8x512xf32> to vector<8x512xf32>
    %7 = vector.broadcast %0 : f32 to vector<8x512xf32>
    %8 = arith.mulf %4, %7 : vector<8x512xf32>
    %9 = vector.broadcast %1 : f32 to vector<8x512xf32>
    %10 = arith.mulf %6, %9 : vector<8x512xf32>
    %11 = arith.addf %8, %10 : vector<8x512xf32>
    %12 = vector.broadcast %2 : f32 to vector<8x512xf32>
    %13 = arith.addf %11, %12 : vector<8x512xf32>
    %c0_6 = arith.constant 0 : index
    %c0_7 = arith.constant 0 : index
    %14 = vector.load %arg3[%c0_6, %c0_7] : memref<8x512xf32, #tpu.memory_space<vmem>>, vector<8x512xf32>
    tpu.vector_store %arg3[%c0_6, %c0_7], %13 {strides = array<i32>} : memref<8x512xf32, #tpu.memory_space<vmem>>, vector<8x512xf32>,
    return
  }
  func.func @transform_0(%arg0: i32) -> i32 {
    %c0_i32 = arith.constant 0 : i32
    %c0_i32_0 = arith.constant 0 : i32
    return %c0_i32 : i32
  }
  func.func @transform_1(%arg0: i32) -> (i32, i32, i32) {
    %c0_i32 = arith.constant 0 : i32
    %c0_i32_0 = arith.constant 0 : i32
    %c0_i32_1 = arith.constant 0 : i32
    return %c0_i32, %arg0, %c0_i32_0 : i32, i32, i32
  }
  func.func @transform_2(%arg0: i32) -> (i32, i32) {
    %c0_i32 = arith.constant 0 : i32
    %c0_i32_0 = arith.constant 0 : i32
    return %arg0, %c0_i32 : i32, i32
  }
}

</mosaic_0001>

<llo_original>
// kernel: tpu_custom_call.1
$region0: #{tpu_custom_call.1}
  #allocation0 [shape = 'u32[]', space=smem, size = 0x4, offset = 0x4, fixed_abs, tag = 'smem constant byte address 0x4 - core index']
  #allocation1 [shape = 'u32[72,128]{1,0:T(1,128)}', space=vmem, size = 0x9000, scoped, tag = 'internal scratch']
  %s0 = inlined_call_operand.hbm [shape: f32[3], index: 0, kind: input, shape index: {}]
  %s1 = inlined_call_operand.hbm [shape: f32[2,8,512], index: 1, kind: input, shape index: {}]
  %s2 = inlined_call_operand.hbm [shape: f32[8,512], index: 2, kind: output, shape index: {}]
  %s3 = sld [smem:[#allocation0]]
  $region26: #{tpu_custom_call.1} parent=0
    _
  %s5 = ssub.s32 1, %s3
  %s6 = scalar_select 0, %s5, %s3
  $region1: #{tpu_custom_call.1} parent=0
    #allocation2 [shape = 'u8[512]{0}', space=smem, size = 0x200, scoped, tag = 'input window, operand 0, single buffered']
    #allocation3 [shape = 's32[1]{0}', space=sflag, size = 0x4, scoped, tag = 'scoped memory for tpu_custom_call.1']
    #allocation4 [shape = 's32[1]{0}', space=sflag, size = 0x4, scoped, tag = 'scoped memory for tpu_custom_call.1']
    #allocation5 [shape = 's32[1]{0}', space=sflag, size = 0x4, scoped, tag = 'scoped memory for tpu_custom_call.1']
    #allocation6 [shape = 'u8[32768]{0}', space=vmem, size = 0x8000, scoped, tag = 'input window, operand 1, single buffered']
    #allocation7 [shape = 'u8[16384]{0}', space=vmem, size = 0x4000, scoped, tag = 'output window, operand 0, single buffered']
    %7 = vsyncpa [#allocation5], 0
    %8 = vsyncpa [#allocation3], 0
    %9 = vsyncpa [#allocation4], 0
    // Predicated region
    $region2: #{tpu_custom_call.1} parent=1 // pred_check
      _
    $region3: #{tpu_custom_call.1} parent=1 // pred_check_branch
      %11 = sbr.rel (0) target = $region5
    $region4: #{tpu_custom_call.1} parent=1 // pred_region
      %13 = vsyncadd [#allocation5], 0
      %s15 = sshll.u32 %s0, 4
      %s16 = int_to_ptr.hbm [resolvable:$true] %s15
      %18 = dma.hbm_to_smem %s16, 16, [#allocation2], [#allocation5]
    $region5: #{tpu_custom_call.1} parent=1 // pred_fallthru
      _
    // Predicated region
    $region6: #{tpu_custom_call.1} parent=1 // pred_check
      _
    $region7: #{tpu_custom_call.1} parent=1 // pred_check_branch
      %20 = sbr.rel (0) target = $region9
    $region8: #{tpu_custom_call.1} parent=1 // pred_region
      %22 = vsyncadd [#allocation3], 0
      %s23 = sshll.u32 %s1, 4
      %s24 = int_to_ptr.hbm [resolvable:$true] %s23
      %s25 = sshll.u32 [#allocation6], 4
      %s26 = int_to_ptr.vmem [resolvable:$true] %s25
      %31 = dma.hbm_to_vmem [thread:$0]  %s24, 1024, %s26, [#allocation3], 512, 512, 32
    $region9: #{tpu_custom_call.1} parent=1 // pred_fallthru
      _
    // Predicated region
    $region10: #{tpu_custom_call.1} parent=1 // pred_check
      _
    $region11: #{tpu_custom_call.1} parent=1 // pred_check_branch
      %33 = sbr.rel (0) target = $region13
    $region12: #{tpu_custom_call.1} parent=1 // pred_region
      %35 = dma.done [#allocation5], 16
    $region13: #{tpu_custom_call.1} parent=1 // pred_fallthru
      _
    // Predicated region
    $region14: #{tpu_custom_call.1} parent=1 // pred_check
      _
    $region15: #{tpu_custom_call.1} parent=1 // pred_check_branch
      %37 = sbr.rel (0) target = $region17
    $region16: #{tpu_custom_call.1} parent=1 // pred_region
      %39 = dma.done [#allocation3], 1024
    $region17: #{tpu_custom_call.1} parent=1 // pred_fallthru
      _
    %40 = sfence
    %s41 = sld [smem:[#allocation2]]
    %s42 = sld [smem:[#allocation2 + $0x1]]
    %s43 = sld [smem:[#allocation2 + $0x2]]
    %v44 = vld [vmem:[#allocation6] sm:$0xff]
    %v45 = vld [vmem:[#allocation6 + $0x8] sm:$0xff]
    %v46 = vld [vmem:[#allocation6 + $0x10] sm:$0xff]
    %v47 = vld [vmem:[#allocation6 + $0x18] sm:$0xff]
    %s48 = scalar_lea.vmem [#allocation6], 32
    %v49 = vld [vmem:[%s48] sm:$0xff]
    %v50 = vld [vmem:[%s48 + $0x8] sm:$0xff]
    %v51 = vld [vmem:[%s48 + $0x10] sm:$0xff]
    %v52 = vld [vmem:[%s48 + $0x18] sm:$0xff]
    %v53 = vstv %s41
    %v54 = vmul.f32 %v44, %v53
    %v55 = vmul.f32 %v45, %v53
    %v56 = vmul.f32 %v46, %v53
    %v57 = vmul.f32 %v47, %v53
    %v58 = vstv %s42
    %v59 = vmul.f32 %v49, %v58
    %v60 = vmul.f32 %v50, %v58
    %v61 = vmul.f32 %v51, %v58
    %v62 = vmul.f32 %v52, %v58
    %v63 = vadd.f32 %v54, %v59
    %v64 = vadd.f32 %v55, %v60
    %v65 = vadd.f32 %v56, %v61
    %v66 = vadd.f32 %v57, %v62
    %v67 = vstv %s43
    %v68 = vadd.f32 %v63, %v67
    %v69 = vadd.f32 %v64, %v67
    %v70 = vadd.f32 %v65, %v67
    %v71 = vadd.f32 %v66, %v67
    %72 = vst [vmem:[#allocation7] sm:$0xff] %v68
    %73 = vst [vmem:[#allocation7 + $0x8] sm:$0xff] %v69
    %74 = vst [vmem:[#allocation7 + $0x10] sm:$0xff] %v70
    %75 = vst [vmem:[#allocation7 + $0x18] sm:$0xff] %v71
    // Predicated region
    $region18: #{tpu_custom_call.1} parent=1 // pred_check
      _
    $region19: #{tpu_custom_call.1} parent=1 // pred_check_branch
      %77 = sbr.rel (0) target = $region21
    $region20: #{tpu_custom_call.1} parent=1 // pred_region
      %79 = vsyncadd [#allocation4], 0
      %s81 = sshll.u32 [#allocation7], 4
      %s82 = int_to_ptr.vmem [resolvable:$true] %s81
      %s83 = sshll.u32 %s2, 4
      %s84 = int_to_ptr.hbm [resolvable:$true] %s83
      %86 = dma.vmem_to_hbm [thread:$0]  %s82, 512, %s84, [#allocation4]
    $region21: #{tpu_custom_call.1} parent=1 // pred_fallthru
      _
    // Predicated region
    $region22: #{tpu_custom_call.1} parent=1 // pred_check
      _
    $region23: #{tpu_custom_call.1} parent=1 // pred_check_branch
      %88 = sbr.rel (0) target = $region25
    $region24: #{tpu_custom_call.1} parent=1 // pred_region
      %90 = dma.done [#allocation4], 512
    $region25: #{tpu_custom_call.1} parent=1 // pred_fallthru
      _
    %91 = vsyncpa [#allocation3], 1
    %92 = vsyncpa [#allocation4], 1
    %93 = vsyncpa [#allocation5], 1

</llo_original>
